<compile_context>
chip_gen: v5e
topology: v5e:2x2
jax: 0.10.0
libtpu: 0.0.40
codegen_flags: <defaults>
</compile_context>

<pallas_src>
import jax
import jax.numpy as jnp
from jax.experimental import pallas as pl
from jax.experimental.pallas import tpu as pltpu

EPS = 1e-5


def bn_add_kernel(x_ref, skip_ref, gamma_ref, beta_ref, o_ref):
    # x_ref/skip_ref/o_ref: [HW, C] (C on lanes); gamma_ref/beta_ref: [1, C]
    x = x_ref[...].astype(jnp.float32)                         # [HW, C]
    hw = x.shape[0]
    inv_n = jnp.float32(1.0 / hw)

    # Per-channel statistics via ones-vector matmuls on the MXU
    # (frees VALU/XLU slots; [1,HW] @ [HW,C] is essentially free here).
    ones = jnp.ones((1, hw), dtype=jnp.float32)
    s = jnp.dot(ones, x, preferred_element_type=jnp.float32)       # [1, C]
    sq = jnp.dot(ones, x * x, preferred_element_type=jnp.float32)  # [1, C]

    mean = s * inv_n
    # clamp: E[x^2] - E[x]^2 may be slightly negative under f32 cancellation
    var = jnp.maximum(sq * inv_n - mean * mean, 0.0)
    inv_std = jax.lax.rsqrt(var + EPS)

    # fold normalization + affine into per-channel scale/shift
    a = inv_std * gamma_ref[...].astype(jnp.float32)            # [1, C]
    b = beta_ref[...].astype(jnp.float32) - mean * a            # [1, C]

    # o = x*a + b + skip  (skip loaded only here; safe with o/skip aliased
    # since every output element depends only on the same-index skip element)
    o_ref[...] = (x * a + b + skip_ref[...].astype(jnp.float32)).astype(o_ref.dtype)


def _batchnorm_add_impl(x, skip, gamma, beta):
    """x, skip: NCHW float32 (N must be 1); gamma, beta: [C]."""
    N, C, H, W = x.shape
    assert N == 1, "kernel specialized for N=1"
    HW = H * W

    # Lane-dense [HW, C] view (C = multiple of 128 on lanes).
    # TODO(synk): in a fused pipeline the producer would emit NHWC and these
    #             transposes become free views instead of tiny HBM passes.
    x2 = x.reshape(C, HW).T          # [HW, C]
    s2 = skip.reshape(C, HW).T       # [HW, C]
    g2 = gamma.reshape(1, C)
    b2 = beta.reshape(1, C)

    out2 = pl.pallas_call(
        bn_add_kernel,
        out_shape=jax.ShapeDtypeStruct((HW, C), x.dtype),
        in_specs=[
            pl.BlockSpec(memory_space=pltpu.MemorySpace.VMEM),
            pl.BlockSpec(memory_space=pltpu.MemorySpace.VMEM),
            pl.BlockSpec(memory_space=pltpu.MemorySpace.VMEM),
            pl.BlockSpec(memory_space=pltpu.MemorySpace.VMEM),
        ],
        out_specs=pl.BlockSpec(memory_space=pltpu.MemorySpace.VMEM),
        # skip is dead after this op -> write the result in place over it
        input_output_aliases={1: 0},
    )(x2, s2, g2, b2)

    # back to NCHW
    return out2.T.reshape(N, C, H, W)


batchnorm_add = jax.jit(_batchnorm_add_impl)


def _reference(x, skip, gamma, beta):
    mean = jnp.mean(x, axis=(0, 2, 3), keepdims=True)
    var = jnp.mean((x - mean) ** 2, axis=(0, 2, 3), keepdims=True)
    y = (x - mean) * jax.lax.rsqrt(var + EPS)
    y = y * gamma.reshape(1, -1, 1, 1) + beta.reshape(1, -1, 1, 1)
    return y + skip


if __name__ == "__main__":
    key = jax.random.PRNGKey(0)
    k1, k2, k3, k4 = jax.random.split(key, 4)

    N, C, H, W = 1, 384, 7, 7
    x752 = jax.random.normal(k1, (N, C, H, W), dtype=jnp.float32)
    x739 = jax.random.normal(k2, (N, C, H, W), dtype=jnp.float32)

    # deterministic "trained" affine parameters (BatchNorm2d(384) weight/bias)
    gamma = 1.0 + 0.1 * jax.random.normal(k3, (C,), dtype=jnp.float32)
    beta = 0.1 * jax.random.normal(k4, (C,), dtype=jnp.float32)

    out = batchnorm_add(x752, x739, gamma, beta)
    jax.block_until_ready(out)

    ref = _reference(x752, x739, gamma, beta)
    assert out.shape == (N, C, H, W)
    assert jnp.allclose(out, ref, atol=1e-4, rtol=1e-4), "mismatch vs reference"

    print("KERNEL_OK")
</pallas_src>

<mosaic_0001>
module attributes {stable_mosaic.version = 11 : i64} {
  func.func @bn_add_kernel(%arg0: memref<49x384xf32, #tpu.memory_space<vmem>>, %arg1: memref<49x384xf32, #tpu.memory_space<vmem>>, %arg2: memref<1x384xf32, #tpu.memory_space<vmem>>, %arg3: memref<1x384xf32, #tpu.memory_space<vmem>>, %arg4: memref<49x384xf32, #tpu.memory_space<vmem>>) attributes {dimension_semantics = [], scalar_prefetch = 0 : i64, scratch_operands = 0 : i64, tpu.core_type = #tpu.core_type<tc>} {
    %c0 = arith.constant 0 : index
    %c0_0 = arith.constant 0 : index
    %0 = vector.load %arg0[%c0, %c0_0] : memref<49x384xf32, #tpu.memory_space<vmem>>, vector<49x384xf32>
    %cst = arith.constant 1.000000e+00 : f32
    %1 = vector.broadcast %cst : f32 to vector<1x49xf32>
    %cst_1 = arith.constant dense<0.000000e+00> : vector<1x384xf32>
    %2 = tpu.matmul %1, %0, %cst_1 {dimension_numbers = #tpu.dot_dimension_numbers<[1], [0], [0], [1], [0, 0, 1, 1], [], []>} : vector<1x49xf32>, vector<49x384xf32>, vector<1x384xf32> -> vector<1x384xf32>
    %3 = arith.mulf %0, %0 : vector<49x384xf32>
    %cst_2 = arith.constant dense<0.000000e+00> : vector<1x384xf32>
    %4 = tpu.matmul %1, %3, %cst_2 {dimension_numbers = #tpu.dot_dimension_numbers<[1], [0], [0], [1], [0, 0, 1, 1], [], []>} : vector<1x49xf32>, vector<49x384xf32>, vector<1x384xf32> -> vector<1x384xf32>
    %cst_3 = arith.constant 0.0204081628 : f32
    %5 = vector.broadcast %cst_3 : f32 to vector<1x384xf32>
    %6 = arith.mulf %2, %5 : vector<1x384xf32>
    %cst_4 = arith.constant 0.0204081628 : f32
    %7 = vector.broadcast %cst_4 : f32 to vector<1x384xf32>
    %8 = arith.mulf %4, %7 : vector<1x384xf32>
    %9 = arith.mulf %6, %6 : vector<1x384xf32>
    %10 = arith.subf %8, %9 : vector<1x384xf32>
    %cst_5 = arith.constant 0.000000e+00 : f32
    %11 = vector.broadcast %cst_5 : f32 to vector<1x384xf32>
    %12 = arith.maximumf %10, %11 : vector<1x384xf32>
    %cst_6 = arith.constant 9.99999974E-6 : f32
    %13 = vector.broadcast %cst_6 : f32 to vector<1x384xf32>
    %14 = arith.addf %12, %13 : vector<1x384xf32>
    %15 = math.rsqrt %14 : vector<1x384xf32>
    %c0_7 = arith.constant 0 : index
    %c0_8 = arith.constant 0 : index
    %16 = vector.load %arg2[%c0_7, %c0_8] : memref<1x384xf32, #tpu.memory_space<vmem>>, vector<1x384xf32>
    %17 = arith.mulf %15, %16 : vector<1x384xf32>
    %c0_9 = arith.constant 0 : index
    %c0_10 = arith.constant 0 : index
    %18 = vector.load %arg3[%c0_9, %c0_10] : memref<1x384xf32, #tpu.memory_space<vmem>>, vector<1x384xf32>
    %19 = arith.mulf %6, %17 : vector<1x384xf32>
    %20 = arith.subf %18, %19 : vector<1x384xf32>
    %21 = vector.broadcast %17 : vector<1x384xf32> to vector<49x384xf32>
    %22 = arith.mulf %0, %21 : vector<49x384xf32>
    %23 = vector.broadcast %20 : vector<1x384xf32> to vector<49x384xf32>
    %24 = arith.addf %22, %23 : vector<49x384xf32>
    %c0_11 = arith.constant 0 : index
    %c0_12 = arith.constant 0 : index
    %25 = vector.load %arg1[%c0_11, %c0_12] : memref<49x384xf32, #tpu.memory_space<vmem>>, vector<49x384xf32>
    %26 = arith.addf %24, %25 : vector<49x384xf32>
    %c0_13 = arith.constant 0 : index
    %c0_14 = arith.constant 0 : index
    %27 = vector.load %arg4[%c0_13, %c0_14] : memref<49x384xf32, #tpu.memory_space<vmem>>, vector<49x384xf32>
    tpu.vector_store %arg4[%c0_13, %c0_14], %26 {strides = array<i32>} : memref<49x384xf32, #tpu.memory_space<vmem>>, vector<49x384xf32>,
    return
  }
}

</mosaic_0001>

<llo_original>
// kernel: _batchnorm_add_impl.1
$region0: #{_batchnorm_add_impl.1}
  #allocation0 [shape = 'u32[]', space=smem, size = 0x4, offset = 0x4, fixed_abs, tag = 'smem constant byte address 0x4 - core index']
  #allocation1 [shape = 'u32[72,128]{1,0:T(1,128)}', space=vmem, size = 0x9000, scoped, tag = 'internal scratch']
  %s0 = inlined_call_operand.vmem [shape: f32[49,384], index: 0, kind: input, shape index: {}]
  %s1 = inlined_call_operand.vmem [shape: f32[49,384], index: 1, kind: input, shape index: {}, may-alias: {1,4}]
  %s2 = inlined_call_operand.vmem [shape: f32[1,384], index: 2, kind: input, shape index: {}]
  %s3 = inlined_call_operand.vmem [shape: f32[1,384], index: 3, kind: input, shape index: {}]
  %s4 = inlined_call_operand.vmem [shape: f32[49,384], index: 4, kind: output, shape index: {}, may-alias: {1,4}]
  %s5 = sld [smem:[#allocation0]]
  $region26: #{_batchnorm_add_impl.1} parent=0
    _
  %s7 = ssub.s32 1, %s5
  %s8 = scalar_select 0, %s7, %s5
  // Predicated region
  $region2: #{_batchnorm_add_impl.1} parent=0 // pred_check
    _
  $region3: #{_batchnorm_add_impl.1} parent=0 // pred_check_branch
    %10 = sbr.rel (0) target = $region5
  $region4: #{_batchnorm_add_impl.1} parent=0 // pred_region
    _
  $region5: #{_batchnorm_add_impl.1} parent=0 // pred_fallthru
    _
  // Predicated region
  $region6: #{_batchnorm_add_impl.1} parent=0 // pred_check
    _
  $region7: #{_batchnorm_add_impl.1} parent=0 // pred_check_branch
    %12 = sbr.rel (0) target = $region9
  $region8: #{_batchnorm_add_impl.1} parent=0 // pred_region
    _
  $region9: #{_batchnorm_add_impl.1} parent=0 // pred_fallthru
    _
  // Predicated region
  $region10: #{_batchnorm_add_impl.1} parent=0 // pred_check
    _
  $region11: #{_batchnorm_add_impl.1} parent=0 // pred_check_branch
    %14 = sbr.rel (0) target = $region13
  $region12: #{_batchnorm_add_impl.1} parent=0 // pred_region
    _
  $region13: #{_batchnorm_add_impl.1} parent=0 // pred_fallthru
    _
  // Predicated region
  $region14: #{_batchnorm_add_impl.1} parent=0 // pred_check
    _
  $region15: #{_batchnorm_add_impl.1} parent=0 // pred_check_branch
    %16 = sbr.rel (0) target = $region17
  $region16: #{_batchnorm_add_impl.1} parent=0 // pred_region
    _
  $region17: #{_batchnorm_add_impl.1} parent=0 // pred_fallthru
    _
  %v17 = vld [vmem:[%s0] sm:$0xff]
  %v18 = vld [vmem:[%s0 + $0x8] sm:$0xff]
  %v19 = vld [vmem:[%s0 + $0x10] sm:$0xff]
  %v20 = vld [vmem:[%s0 + $0x18] sm:$0xff]
  %v21 = vld [vmem:[%s0 + $0x20] sm:$0xff]
  %v22 = vld [vmem:[%s0 + $0x28] sm:$0xff]
  %v23 = vld [vmem:[%s0 + $0x30] sm:$0xff]
  %v24 = vld [vmem:[%s0 + $0x38] sm:$0xff]
  %v25 = vld [vmem:[%s0 + $0x40] sm:$0xff]
  %v26 = vld [vmem:[%s0 + $0x48] sm:$0xff]
  %v27 = vld [vmem:[%s0 + $0x50] sm:$0xff]
  %v28 = vld [vmem:[%s0 + $0x58] sm:$0xff]
  %v29 = vld [vmem:[%s0 + $0x60] sm:$0xff]
  %v30 = vld [vmem:[%s0 + $0x68] sm:$0xff]
  %v31 = vld [vmem:[%s0 + $0x70] sm:$0xff]
  %v32 = vld [vmem:[%s0 + $0x78] sm:$0xff]
  %v33 = vld [vmem:[%s0 + $0x80] sm:$0xff]
  %v34 = vld [vmem:[%s0 + $0x88] sm:$0xff]
  %v35 = vld [vmem:[%s0 + $0x90] sm:$0x1]
  %v36 = vld [vmem:[%s0 + $0x98] sm:$0x1]
  %v37 = vld [vmem:[%s0 + $0xa0] sm:$0x1]
  %vm38 = vcmask 400384
  %v40 = vsel %vm38, 1.0, 0
  %vm42 = vcmask 1040384
  %v44 = vsel %vm42, %v35, 0
  %v47 = vsel %vm42, %v36, 0
  %v50 = vsel %vm42, %v37, 0
  %52 = vmatpush.msra.mxu0 0.0
  %53 = vmatpush.msra.mxu0 0.0
  %54 = vmatpush.msra.mxu0 0.0
  %55 = vmatpush.msra.mxu0 0.0
  %56 = vmatpush.msra.mxu0 0.0
  %57 = vmatpush.msra.mxu0 0.0
  %58 = vmatpush.msra.mxu0 0.0
  %59 = vmatpush.msra.mxu0 0.0
  %60 = vmatpush.msra.mxu0 0.0
  %61 = vmatpush.msra.mxu0 %v44
  %62 = vmatpush.msra.mxu0 %v32
  %63 = vmatpush.msra.mxu0 %v29
  %64 = vmatpush.msra.mxu0 %v26
  %65 = vmatpush.msra.mxu0 %v23
  %66 = vmatpush.msra.mxu0 %v20
  %67 = vmatpush.msra.mxu0 %v17
  %68 = vmatmul.f32.gmra.mxu0 %v40
  %v69 = vpop.f32.mrf.mxu0
  %v70 = vadd.f32 0.0, %v69
  %71 = vdwg.mxu0
  %72 = vmatpush.msra.mxu0 0.0
  %73 = vmatpush.msra.mxu0 0.0
  %74 = vmatpush.msra.mxu0 0.0
  %75 = vmatpush.msra.mxu0 0.0
  %76 = vmatpush.msra.mxu0 0.0
  %77 = vmatpush.msra.mxu0 0.0
  %78 = vmatpush.msra.mxu0 0.0
  %79 = vmatpush.msra.mxu0 0.0
  %80 = vmatpush.msra.mxu0 0.0
  %81 = vmatpush.msra.mxu0 %v47
  %82 = vmatpush.msra.mxu0 %v33
  %83 = vmatpush.msra.mxu0 %v30
  %84 = vmatpush.msra.mxu0 %v27
  %85 = vmatpush.msra.mxu0 %v24
  %86 = vmatpush.msra.mxu0 %v21
  %87 = vmatpush.msra.mxu0 %v18
  %88 = vmatmul.f32.gmra.mxu0 %v40
  %v89 = vpop.f32.mrf.mxu0
  %v90 = vadd.f32 0.0, %v89
  %91 = vdwg.mxu0
  %92 = vmatpush.msra.mxu0 0.0
  %93 = vmatpush.msra.mxu0 0.0
  %94 = vmatpush.msra.mxu0 0.0
  %95 = vmatpush.msra.mxu0 0.0
  %96 = vmatpush.msra.mxu0 0.0
  %97 = vmatpush.msra.mxu0 0.0
  %98 = vmatpush.msra.mxu0 0.0
  %99 = vmatpush.msra.mxu0 0.0
  %100 = vmatpush.msra.mxu0 0.0
  %101 = vmatpush.msra.mxu0 %v50
  %102 = vmatpush.msra.mxu0 %v34
  %103 = vmatpush.msra.mxu0 %v31
  %104 = vmatpush.msra.mxu0 %v28
  %105 = vmatpush.msra.mxu0 %v25
  %106 = vmatpush.msra.mxu0 %v22
  %107 = vmatpush.msra.mxu0 %v19
  %108 = vmatmul.f32.gmra.mxu0 %v40
  %v109 = vpop.f32.mrf.mxu0
  %v110 = vadd.f32 0.0, %v109
  %111 = vdwg.mxu0
  %v112 = vmul.f32 %v17, %v17
  %v113 = vmul.f32 %v18, %v18
  %v114 = vmul.f32 %v19, %v19
  %v115 = vmul.f32 %v20, %v20
  %v116 = vmul.f32 %v21, %v21
  %v117 = vmul.f32 %v22, %v22
  %v118 = vmul.f32 %v23, %v23
  %v119 = vmul.f32 %v24, %v24
  %v120 = vmul.f32 %v25, %v25
  %v121 = vmul.f32 %v26, %v26
  %v122 = vmul.f32 %v27, %v27
  %v123 = vmul.f32 %v28, %v28
  %v124 = vmul.f32 %v29, %v29
  %v125 = vmul.f32 %v30, %v30
  %v126 = vmul.f32 %v31, %v31
  %v127 = vmul.f32 %v32, %v32
  %v128 = vmul.f32 %v33, %v33
  %v129 = vmul.f32 %v34, %v34
  %v130 = vmul.f32 %v35, %v35
  %v131 = vmul.f32 %v36, %v36
  %v132 = vmul.f32 %v37, %v37
  %v134 = vsel %vm42, %v130, 0
  %v137 = vsel %vm42, %v131, 0
  %v140 = vsel %vm42, %v132, 0
  %142 = vmatpush.msra.mxu0 0.0
  %143 = vmatpush.msra.mxu0 0.0
  %144 = vmatpush.msra.mxu0 0.0
  %145 = vmatpush.msra.mxu0 0.0
  %146 = vmatpush.msra.mxu0 0.0
  %147 = vmatpush.msra.mxu0 0.0
  %148 = vmatpush.msra.mxu0 0.0
  %149 = vmatpush.msra.mxu0 0.0
  %150 = vmatpush.msra.mxu0 0.0
  %151 = vmatpush.msra.mxu0 %v134
  %152 = vmatpush.msra.mxu0 %v127
  %153 = vmatpush.msra.mxu0 %v124
  %154 = vmatpush.msra.mxu0 %v121
  %155 = vmatpush.msra.mxu0 %v118
  %156 = vmatpush.msra.mxu0 %v115
  %157 = vmatpush.msra.mxu0 %v112
  %158 = vmatmul.f32.gmra.mxu0 %v40
  %v159 = vpop.f32.mrf.mxu0
  %v160 = vadd.f32 0.0, %v159
  %161 = vdwg.mxu0
  %162 = vmatpush.msra.mxu0 0.0
  %163 = vmatpush.msra.mxu0 0.0
  %164 = vmatpush.msra.mxu0 0.0
  %165 = vmatpush.msra.mxu0 0.0
  %166 = vmatpush.msra.mxu0 0.0
  %167 = vmatpush.msra.mxu0 0.0
  %168 = vmatpush.msra.mxu0 0.0
  %169 = vmatpush.msra.mxu0 0.0
  %170 = vmatpush.msra.mxu0 0.0
  %171 = vmatpush.msra.mxu0 %v137
  %172 = vmatpush.msra.mxu0 %v128
  %173 = vmatpush.msra.mxu0 %v125
  %174 = vmatpush.msra.mxu0 %v122
  %175 = vmatpush.msra.mxu0 %v119
  %176 = vmatpush.msra.mxu0 %v116
  %177 = vmatpush.msra.mxu0 %v113
  %178 = vmatmul.f32.gmra.mxu0 %v40
  %v179 = vpop.f32.mrf.mxu0
  %v180 = vadd.f32 0.0, %v179
  %181 = vdwg.mxu0
  %182 = vmatpush.msra.mxu0 0.0
  %183 = vmatpush.msra.mxu0 0.0
  %184 = vmatpush.msra.mxu0 0.0
  %185 = vmatpush.msra.mxu0 0.0
  %186 = vmatpush.msra.mxu0 0.0
  %187 = vmatpush.msra.mxu0 0.0
  %188 = vmatpush.msra.mxu0 0.0
  %189 = vmatpush.msra.mxu0 0.0
  %190 = vmatpush.msra.mxu0 0.0
  %191 = vmatpush.msra.mxu0 %v140
  %192 = vmatpush.msra.mxu0 %v129
  %193 = vmatpush.msra.mxu0 %v126
  %194 = vmatpush.msra.mxu0 %v123
  %195 = vmatpush.msra.mxu0 %v120
  %196 = vmatpush.msra.mxu0 %v117
  %197 = vmatpush.msra.mxu0 %v114
  %198 = vmatmul.f32.gmra.mxu0 %v40
  %v199 = vpop.f32.mrf.mxu0
  %v200 = vadd.f32 0.0, %v199
  %201 = vdwg.mxu0
  %v202 = vmul.f32 %v70, 0.020408163
  %v203 = vmul.f32 %v90, 0.020408163
  %v204 = vmul.f32 %v110, 0.020408163
  %v205 = vmul.f32 %v160, 0.020408163
  %v206 = vmul.f32 %v180, 0.020408163
  %v207 = vmul.f32 %v200, 0.020408163
  %v208 = vmul.f32 %v202, %v202
  %v209 = vmul.f32 %v203, %v203
  %v210 = vmul.f32 %v204, %v204
  %v211 = vsub.f32 %v205, %v208
  %v212 = vsub.f32 %v206, %v209
  %v213 = vsub.f32 %v207, %v210
  %v214 = vmax.f32 %v211, 0.0
  %v215 = vmax.f32 %v212, 0.0
  %v216 = vmax.f32 %v213, 0.0
  %v217 = vadd.f32 %v214, 1e-05
  %v218 = vadd.f32 %v215, 1e-05
  %v219 = vadd.f32 %v216, 1e-05
  %v220 = vrsqrt.pop %v217
  %v221 = vmul.f32 %v220, %v217
  %v222 = vmul.f32 %v221, %v220
  %v223 = vmul.f32 0.5, %v222
  %v224 = vsub.f32 1.5, %v223
  %v225 = vmul.f32 %v220, %v224
  %vm226 = vweird.f32 %v217
  %vm227 = vweird.f32 %v220
  %vm228 = vmor %vm226, %vm227
  %v229 = vsel %vm228, %v220, %v225
  %v230 = vrsqrt.pop %v218
  %v231 = vmul.f32 %v230, %v218
  %v232 = vmul.f32 %v231, %v230
  %v233 = vmul.f32 0.5, %v232
  %v234 = vsub.f32 1.5, %v233
  %v235 = vmul.f32 %v230, %v234
  %vm236 = vweird.f32 %v218
  %vm237 = vweird.f32 %v230
  %vm238 = vmor %vm236, %vm237
  %v239 = vsel %vm238, %v230, %v235
  %v240 = vrsqrt.pop %v219
  %v241 = vmul.f32 %v240, %v219
  %v242 = vmul.f32 %v241, %v240
  %v243 = vmul.f32 0.5, %v242
  %v244 = vsub.f32 1.5, %v243
  %v245 = vmul.f32 %v240, %v244
  %vm246 = vweird.f32 %v219
  %vm247 = vweird.f32 %v240
  %vm248 = vmor %vm246, %vm247
  %v249 = vsel %vm248, %v240, %v245
  %v250 = vld [vmem:[%s2] sm:$0x7]
  %v252 = vperm.slane %v250, 0
  %v253 = vperm.slane %v250, 1
  %v254 = vperm.slane %v250, 2
  %v258 = vmul.f32 %v229, %v252
  %v259 = vmul.f32 %v239, %v253
  %v260 = vmul.f32 %v249, %v254
  %v261 = vld [vmem:[%s3] sm:$0x7]
  %v262 = vmul.f32 %v202, %v258
  %v263 = vmul.f32 %v203, %v259
  %v264 = vmul.f32 %v204, %v260
  %v268 = vrot.slane %v263, 7
  %v269 = vrot.slane %v264, 6
  %v270 = vsel %vm42, %v262, %v268
  %vm271 = vcmask 1041408
  %v272 = vsel %vm271, %v270, %v269
  %v274 = vsub.f32 %v261, %v272
  %v275 = vperm.slane %v258, 0
  %v276 = vperm.slane %v259, 0
  %v277 = vperm.slane %v260, 0
  %v278 = vmul.f32 %v17, %v275
  %v279 = vmul.f32 %v18, %v276
  %v280 = vmul.f32 %v19, %v277
  %v281 = vmul.f32 %v20, %v275
  %v282 = vmul.f32 %v21, %v276
  %v283 = vmul.f32 %v22, %v277
  %v284 = vmul.f32 %v23, %v275
  %v285 = vmul.f32 %v24, %v276
  %v286 = vmul.f32 %v25, %v277
  %v287 = vmul.f32 %v26, %v275
  %v288 = vmul.f32 %v27, %v276
  %v289 = vmul.f32 %v28, %v277
  %v290 = vmul.f32 %v29, %v275
  %v291 = vmul.f32 %v30, %v276
  %v292 = vmul.f32 %v31, %v277
  %v293 = vmul.f32 %v32, %v275
  %v294 = vmul.f32 %v33, %v276
  %v295 = vmul.f32 %v34, %v277
  %v296 = vmul.f32 %v35, %v275
  %v297 = vmul.f32 %v36, %v276
  %v298 = vmul.f32 %v37, %v277
  %v300 = vperm.slane %v274, 0
  %v301 = vperm.slane %v274, 1
  %v302 = vperm.slane %v274, 2
  %v306 = vadd.f32 %v278, %v300
  %v307 = vadd.f32 %v279, %v301
  %v308 = vadd.f32 %v280, %v302
  %v309 = vadd.f32 %v281, %v300
  %v310 = vadd.f32 %v282, %v301
  %v311 = vadd.f32 %v283, %v302
  %v312 = vadd.f32 %v284, %v300
  %v313 = vadd.f32 %v285, %v301
  %v314 = vadd.f32 %v286, %v302
  %v315 = vadd.f32 %v287, %v300
  %v316 = vadd.f32 %v288, %v301
  %v317 = vadd.f32 %v289, %v302
  %v318 = vadd.f32 %v290, %v300
  %v319 = vadd.f32 %v291, %v301
  %v320 = vadd.f32 %v292, %v302
  %v321 = vadd.f32 %v293, %v300
  %v322 = vadd.f32 %v294, %v301
  %v323 = vadd.f32 %v295, %v302
  %v324 = vadd.f32 %v296, %v300
  %v325 = vadd.f32 %v297, %v301
  %v326 = vadd.f32 %v298, %v302
  %v327 = vld [vmem:[%s1] sm:$0xff]
  %v328 = vld [vmem:[%s1 + $0x8] sm:$0xff]
  %v329 = vld [vmem:[%s1 + $0x10] sm:$0xff]
  %v330 = vld [vmem:[%s1 + $0x18] sm:$0xff]
  %v331 = vld [vmem:[%s1 + $0x20] sm:$0xff]
  %v332 = vld [vmem:[%s1 + $0x28] sm:$0xff]
  %v333 = vld [vmem:[%s1 + $0x30] sm:$0xff]
  %v334 = vld [vmem:[%s1 + $0x38] sm:$0xff]
  %v335 = vld [vmem:[%s1 + $0x40] sm:$0xff]
  %v336 = vld [vmem:[%s1 + $0x48] sm:$0xff]
  %v337 = vld [vmem:[%s1 + $0x50] sm:$0xff]
  %v338 = vld [vmem:[%s1 + $0x58] sm:$0xff]
  %v339 = vld [vmem:[%s1 + $0x60] sm:$0xff]
  %v340 = vld [vmem:[%s1 + $0x68] sm:$0xff]
  %v341 = vld [vmem:[%s1 + $0x70] sm:$0xff]
  %v342 = vld [vmem:[%s1 + $0x78] sm:$0xff]
  %v343 = vld [vmem:[%s1 + $0x80] sm:$0xff]
  %v344 = vld [vmem:[%s1 + $0x88] sm:$0xff]
  %v345 = vld [vmem:[%s1 + $0x90] sm:$0x1]
  %v346 = vld [vmem:[%s1 + $0x98] sm:$0x1]
  %v347 = vld [vmem:[%s1 + $0xa0] sm:$0x1]
  %v348 = vadd.f32 %v306, %v327
  %v349 = vadd.f32 %v307, %v328
  %v350 = vadd.f32 %v308, %v329
  %v351 = vadd.f32 %v309, %v330
  %v352 = vadd.f32 %v310, %v331
  %v353 = vadd.f32 %v311, %v332
  %v354 = vadd.f32 %v312, %v333
  %v355 = vadd.f32 %v313, %v334
  %v356 = vadd.f32 %v314, %v335
  %v357 = vadd.f32 %v315, %v336
  %v358 = vadd.f32 %v316, %v337
  %v359 = vadd.f32 %v317, %v338
  %v360 = vadd.f32 %v318, %v339
  %v361 = vadd.f32 %v319, %v340
  %v362 = vadd.f32 %v320, %v341
  %v363 = vadd.f32 %v321, %v342
  %v364 = vadd.f32 %v322, %v343
  %v365 = vadd.f32 %v323, %v344
  %v366 = vadd.f32 %v324, %v345
  %v367 = vadd.f32 %v325, %v346
  %v368 = vadd.f32 %v326, %v347
  %369 = vst [vmem:[%s4] sm:$0xff] %v348
  %370 = vst [vmem:[%s4 + $0x8] sm:$0xff] %v349
  %371 = vst [vmem:[%s4 + $0x10] sm:$0xff] %v350
  %372 = vst [vmem:[%s4 + $0x18] sm:$0xff] %v351
  %373 = vst [vmem:[%s4 + $0x20] sm:$0xff] %v352
  %374 = vst [vmem:[%s4 + $0x28] sm:$0xff] %v353
  %375 = vst [vmem:[%s4 + $0x30] sm:$0xff] %v354
  %376 = vst [vmem:[%s4 + $0x38] sm:$0xff] %v355
  %377 = vst [vmem:[%s4 + $0x40] sm:$0xff] %v356
  %378 = vst [vmem:[%s4 + $0x48] sm:$0xff] %v357
  %379 = vst [vmem:[%s4 + $0x50] sm:$0xff] %v358
  %380 = vst [vmem:[%s4 + $0x58] sm:$0xff] %v359
  %381 = vst [vmem:[%s4 + $0x60] sm:$0xff] %v360
  %382 = vst [vmem:[%s4 + $0x68] sm:$0xff] %v361
  %383 = vst [vmem:[%s4 + $0x70] sm:$0xff] %v362
  %384 = vst [vmem:[%s4 + $0x78] sm:$0xff] %v363
  %385 = vst [vmem:[%s4 + $0x80] sm:$0xff] %v364
  %386 = vst [vmem:[%s4 + $0x88] sm:$0xff] %v365
  %387 = vst [vmem:[%s4 + $0x90] sm:$0x1] %v366
  %388 = vst [vmem:[%s4 + $0x98] sm:$0x1] %v367
  %389 = vst [vmem:[%s4 + $0xa0] sm:$0x1] %v368
  // Predicated region
  $region18: #{_batchnorm_add_impl.1} parent=0 // pred_check
    _
  $region19: #{_batchnorm_add_impl.1} parent=0 // pred_check_branch
    %391 = sbr.rel (0) target = $region21
  $region20: #{_batchnorm_add_impl.1} parent=0 // pred_region
    _
  $region21: #{_batchnorm_add_impl.1} parent=0 // pred_fallthru
    _
  // Predicated region
  $region22: #{_batchnorm_add_impl.1} parent=0 // pred_check
    _
  $region23: #{_batchnorm_add_impl.1} parent=0 // pred_check_branch
    %393 = sbr.rel (0) target = $region25
  $region24: #{_batchnorm_add_impl.1} parent=0 // pred_region
    _
  $region25: #{_batchnorm_add_impl.1} parent=0 // pred_fallthru
    _

</llo_original>
